<compile_context>
chip_gen: v5e
topology: v5e:2x2
jax: 0.10.0
libtpu: 0.0.40
codegen_flags: <defaults>
</compile_context>

<pallas_src>
import jax
import jax.numpy as jnp
from jax import lax
from jax.experimental import pallas as pl
from jax.experimental.pallas import tpu as pltpu


# ---------------------------------------------------------------------------
# Fused per-batch kernel
# ---------------------------------------------------------------------------
def _seqcls_fused_kernel(x_ref, wc_ref, wb_ref, ws1_ref, ws2_ref,
                         w1_ref, b1_ref, w2_ref, b2_ref, o_ref):
    # Per grid step (one batch element):
    #   x_ref  : (C, S, D)      raw input, channel axis leading (no transpose)
    #   wc_ref : (C, 1, 1)      midi_compressor weight as per-channel scalars
    #   wb_ref : (D, HS)        midibert stub projection
    #   ws1_ref: (HS, DA)       SelfAttention ws1 (torch weight transposed)
    #   ws2_ref: (DA, R)        SelfAttention ws2 (torch weight transposed)
    #   w1_ref : (R, HS, H1)    classifier layer-1 weight, (r, hs) row order
    #   b1_ref : (1, H1)
    #   w2_ref : (H1, NCLASS)
    #   b2_ref : (1, NCLASS)
    #   o_ref  : (1, NCLASS)
    C = x_ref.shape[0]
    R = w1_ref.shape[0]

    # --- 1) midi compressor: contract leading channel axis (cheap VPU adds) ---
    x = x_ref[...]                       # (C, S, D)
    wc = wc_ref[...]                     # (C, 1, 1)
    comp = x[0] * wc[0]                  # (S, D) * (1, 1) broadcast
    for c in range(1, C):
        comp = comp + x[c] * wc[c]

    # --- 2) midibert stub: tanh(Linear(D -> HS)) ---
    # TODO(synk): real midibert encoder (hidden_states[layer]) not translatable.
    h = jnp.tanh(jnp.dot(comp, wb_ref[...],
                         preferred_element_type=jnp.float32))         # (S, HS)

    # --- 3) SelfAttention pooling: softmax over the sequence axis ---
    a = jnp.tanh(jnp.dot(h, ws1_ref[...],
                         preferred_element_type=jnp.float32))         # (S, DA)
    s = jnp.dot(a, ws2_ref[...],
                preferred_element_type=jnp.float32)                   # (S, R)
    s = s - jnp.max(s, axis=0, keepdims=True)
    e = jnp.exp(s)
    attn = e / jnp.sum(e, axis=0, keepdims=True)                      # (S, R)
    # attn^T @ h without an explicit transpose: contract the shared S axis.
    m = lax.dot_general(attn, h,
                        dimension_numbers=(((0,), (0,)), ((), ())),
                        preferred_element_type=jnp.float32)           # (R, HS)

    # --- 4) classifier: flat(m) @ W1 == sum_r m[r] @ W1[r]  (no reshape) ---
    h1 = b1_ref[...]                                                  # (1, H1)
    for r in range(R):
        h1 = h1 + jnp.dot(m[r:r + 1, :], w1_ref[r],
                          preferred_element_type=jnp.float32)
    h1 = jnp.maximum(h1, 0.0)
    o_ref[...] = jnp.dot(h1, w2_ref[...],
                         preferred_element_type=jnp.float32) + b2_ref[...]


# ---------------------------------------------------------------------------
# Full forward: one fused pallas_call, batch-parallel grid
# ---------------------------------------------------------------------------
def sequence_classification_forward(x, attn_mask, layer, params):
    # TODO(synk): attn_mask / layer feed the real midibert; unused by the stub.
    del attn_mask, layer
    x = x.astype(jnp.float32)            # matches x.float(); no-op if already f32
    B, C, S, D = x.shape
    HS = params["w_bert"].shape[1]
    DA = params["ws1_t"].shape[1]
    R = params["ws2_t"].shape[1]
    CLS_HID = params["w1_t"].shape[1]
    NCLASS = params["w2_t"].shape[1]

    # Free host-side weight re-layouts (tiny, metadata-level):
    wc_b = params["w_comp"].reshape(C, 1, 1)          # (1,C) -> (C,1,1) scalars
    w1_r = params["w1_t"].reshape(R, HS, CLS_HID)     # flat (R*HS,H1) -> (R,HS,H1)

    out3 = pl.pallas_call(
        _seqcls_fused_kernel,
        out_shape=jax.ShapeDtypeStruct((B, 1, NCLASS), jnp.float32),
        grid=(B,),
        in_specs=[
            pl.BlockSpec((None, C, S, D), lambda b: (b, 0, 0, 0)),
            pl.BlockSpec((C, 1, 1), lambda b: (0, 0, 0)),
            pl.BlockSpec((D, HS), lambda b: (0, 0)),
            pl.BlockSpec((HS, DA), lambda b: (0, 0)),
            pl.BlockSpec((DA, R), lambda b: (0, 0)),
            pl.BlockSpec((R, HS, CLS_HID), lambda b: (0, 0, 0)),
            pl.BlockSpec((1, CLS_HID), lambda b: (0, 0)),
            pl.BlockSpec((CLS_HID, NCLASS), lambda b: (0, 0)),
            pl.BlockSpec((1, NCLASS), lambda b: (0, 0)),
        ],
        out_specs=pl.BlockSpec((None, 1, NCLASS), lambda b: (b, 0, 0)),
        compiler_params=pltpu.CompilerParams(
            dimension_semantics=("parallel",)),
    )(x, wc_b, params["w_bert"], params["ws1_t"], params["ws2_t"],
      w1_r, params["b1"], params["w2_t"], params["b2"])
    return out3.reshape(B, NCLASS)


# Pure-JAX reference of the identical math (for correctness check).
def _reference_forward(x, params):
    xf = x.astype(jnp.float32)
    compressed = jnp.einsum("bcsd,c->bsd", xf, params["w_comp"][0])
    h = jnp.tanh(jnp.einsum("bsd,dk->bsk", compressed, params["w_bert"]))
    a = jnp.tanh(jnp.einsum("bsk,kd->bsd", h, params["ws1_t"]))
    s = jnp.einsum("bsd,dr->bsr", a, params["ws2_t"])
    attn = jax.nn.softmax(s, axis=1)                   # softmax over seq
    attn_mat = jnp.transpose(attn, (0, 2, 1))          # (B, r, S)
    m = jnp.einsum("brs,bsk->brk", attn_mat, h)
    flat = m.reshape(x.shape[0], -1)
    hcls = jnp.maximum(flat @ params["w1_t"] + params["b1"], 0.0)
    return hcls @ params["w2_t"] + params["b2"]


if __name__ == "__main__":
    # Small shapes consistent with the module: midi_size=10 channel axis,
    # seq=8, per-token feature dim=16, hidden size hs=32, da=128, r=4, 5 classes.
    B, C_MIDI, S, D = 2, 10, 8, 16
    HS, DA, R, NCLASS, CLS_HID = 32, 128, 4, 5, 256

    key = jax.random.PRNGKey(0)
    ks = jax.random.split(key, 8)

    x = jax.random.normal(ks[0], (B, C_MIDI, S, D), dtype=jnp.float32)
    attn_mask = jnp.ones((B, S), dtype=jnp.float32)   # unused by the bert stub
    layer = -1                                        # unused by the bert stub

    scale = 0.1
    params = {
        # nn.Linear(10, 1, bias=False): torch weight (1, 10)
        "w_comp": scale * jax.random.normal(ks[1], (1, C_MIDI), dtype=jnp.float32),
        # midibert stub projection D -> hs
        "w_bert": scale * jax.random.normal(ks[2], (D, HS), dtype=jnp.float32),
        # SelfAttention ws1: torch (da, hs) stored transposed as (hs, da)
        "ws1_t": scale * jax.random.normal(ks[3], (HS, DA), dtype=jnp.float32),
        # SelfAttention ws2: torch (r, da) stored transposed as (da, r)
        "ws2_t": scale * jax.random.normal(ks[4], (DA, R), dtype=jnp.float32),
        # classifier Linear(hs*r, 256) (+bias) stored transposed, rows (r, hs)-major
        "w1_t": scale * jax.random.normal(ks[5], (HS * R, CLS_HID), dtype=jnp.float32),
        "b1": scale * jax.random.normal(ks[6], (1, CLS_HID), dtype=jnp.float32),
        # classifier Linear(256, class_num) (+bias) stored transposed
        "w2_t": scale * jax.random.normal(ks[7], (CLS_HID, NCLASS), dtype=jnp.float32),
        "b2": jnp.zeros((1, NCLASS), dtype=jnp.float32),
    }

    out = sequence_classification_forward(x, attn_mask, layer, params)
    out = jax.block_until_ready(out)

    ref = _reference_forward(x, params)
    assert out.shape == (B, NCLASS), out.shape
    assert jnp.allclose(out, ref, atol=1e-4, rtol=1e-4), "Pallas output mismatch vs reference"

    print("KERNEL_OK")
</pallas_src>

<mosaic_0001>
module attributes {stable_mosaic.version = 11 : i64} {
  func.func @_seqcls_fused_kernel(%arg0: i32, %arg1: memref<1x10x8x16xf32, #tpu.memory_space<vmem>>, %arg2: memref<10x1x1xf32, #tpu.memory_space<vmem>>, %arg3: memref<16x32xf32, #tpu.memory_space<vmem>>, %arg4: memref<32x128xf32, #tpu.memory_space<vmem>>, %arg5: memref<128x4xf32, #tpu.memory_space<vmem>>, %arg6: memref<4x32x256xf32, #tpu.memory_space<vmem>>, %arg7: memref<1x256xf32, #tpu.memory_space<vmem>>, %arg8: memref<256x5xf32, #tpu.memory_space<vmem>>, %arg9: memref<1x5xf32, #tpu.memory_space<vmem>>, %arg10: memref<1x1x5xf32, #tpu.memory_space<vmem>>) attributes {dimension_semantics = [#tpu.dimension_semantics<parallel>], iteration_bounds = array<i64: 2>, scalar_prefetch = 0 : i64, scratch_operands = 0 : i64, tpu.core_type = #tpu.core_type<tc>, window_params = [{transform_indices = @transform_0, window_bounds = array<i64: 1, 10, 8, 16>}, {pipeline_mode = #tpu.pipeline_mode<synchronous>, transform_indices = @transform_1, window_bounds = array<i64: 10, 1, 1>}, {pipeline_mode = #tpu.pipeline_mode<synchronous>, transform_indices = @transform_2, window_bounds = array<i64: 16, 32>}, {pipeline_mode = #tpu.pipeline_mode<synchronous>, transform_indices = @transform_3, window_bounds = array<i64: 32, 128>}, {pipeline_mode = #tpu.pipeline_mode<synchronous>, transform_indices = @transform_4, window_bounds = array<i64: 128, 4>}, {pipeline_mode = #tpu.pipeline_mode<synchronous>, transform_indices = @transform_5, window_bounds = array<i64: 4, 32, 256>}, {pipeline_mode = #tpu.pipeline_mode<synchronous>, transform_indices = @transform_6, window_bounds = array<i64: 1, 256>}, {pipeline_mode = #tpu.pipeline_mode<synchronous>, transform_indices = @transform_7, window_bounds = array<i64: 256, 5>}, {pipeline_mode = #tpu.pipeline_mode<synchronous>, transform_indices = @transform_8, window_bounds = array<i64: 1, 5>}, {transform_indices = @transform_9, window_bounds = array<i64: 1, 1, 5>}]} {
    %c0 = arith.constant 0 : index
    %c0_0 = arith.constant 0 : index
    %c0_1 = arith.constant 0 : index
    %c0_2 = arith.constant 0 : index
    %0 = vector.load %arg1[%c0, %c0_0, %c0_1, %c0_2] : memref<1x10x8x16xf32, #tpu.memory_space<vmem>>, vector<1x10x8x16xf32>
    %1 = vector.shape_cast %0 : vector<1x10x8x16xf32> to vector<10x8x16xf32>
    %c0_3 = arith.constant 0 : index
    %c0_4 = arith.constant 0 : index
    %c0_5 = arith.constant 0 : index
    %2 = vector.load %arg2[%c0_3, %c0_4, %c0_5] : memref<10x1x1xf32, #tpu.memory_space<vmem>>, vector<10x1x1xf32>
    %3 = vector.extract_strided_slice %1 {offsets = [0, 0, 0], sizes = [1, 8, 16], strides = [1, 1, 1]} : vector<10x8x16xf32> to vector<1x8x16xf32>
    %4 = vector.shape_cast %3 : vector<1x8x16xf32> to vector<8x16xf32>
    %5 = vector.extract_strided_slice %2 {offsets = [0, 0, 0], sizes = [1, 1, 1], strides = [1, 1, 1]} : vector<10x1x1xf32> to vector<1x1x1xf32>
    %6 = vector.shape_cast %5 : vector<1x1x1xf32> to vector<1x1xf32>
    %7 = vector.broadcast %6 : vector<1x1xf32> to vector<8x16xf32>
    %8 = arith.mulf %4, %7 : vector<8x16xf32>
    %9 = vector.extract_strided_slice %1 {offsets = [1, 0, 0], sizes = [1, 8, 16], strides = [1, 1, 1]} : vector<10x8x16xf32> to vector<1x8x16xf32>
    %10 = vector.shape_cast %9 : vector<1x8x16xf32> to vector<8x16xf32>
    %11 = vector.extract_strided_slice %2 {offsets = [1, 0, 0], sizes = [1, 1, 1], strides = [1, 1, 1]} : vector<10x1x1xf32> to vector<1x1x1xf32>
    %12 = vector.shape_cast %11 : vector<1x1x1xf32> to vector<1x1xf32>
    %13 = vector.broadcast %12 : vector<1x1xf32> to vector<8x16xf32>
    %14 = arith.mulf %10, %13 : vector<8x16xf32>
    %15 = arith.addf %8, %14 : vector<8x16xf32>
    %16 = vector.extract_strided_slice %1 {offsets = [2, 0, 0], sizes = [1, 8, 16], strides = [1, 1, 1]} : vector<10x8x16xf32> to vector<1x8x16xf32>
    %17 = vector.shape_cast %16 : vector<1x8x16xf32> to vector<8x16xf32>
    %18 = vector.extract_strided_slice %2 {offsets = [2, 0, 0], sizes = [1, 1, 1], strides = [1, 1, 1]} : vector<10x1x1xf32> to vector<1x1x1xf32>
    %19 = vector.shape_cast %18 : vector<1x1x1xf32> to vector<1x1xf32>
    %20 = vector.broadcast %19 : vector<1x1xf32> to vector<8x16xf32>
    %21 = arith.mulf %17, %20 : vector<8x16xf32>
    %22 = arith.addf %15, %21 : vector<8x16xf32>
    %23 = vector.extract_strided_slice %1 {offsets = [3, 0, 0], sizes = [1, 8, 16], strides = [1, 1, 1]} : vector<10x8x16xf32> to vector<1x8x16xf32>
    %24 = vector.shape_cast %23 : vector<1x8x16xf32> to vector<8x16xf32>
    %25 = vector.extract_strided_slice %2 {offsets = [3, 0, 0], sizes = [1, 1, 1], strides = [1, 1, 1]} : vector<10x1x1xf32> to vector<1x1x1xf32>
    %26 = vector.shape_cast %25 : vector<1x1x1xf32> to vector<1x1xf32>
    %27 = vector.broadcast %26 : vector<1x1xf32> to vector<8x16xf32>
    %28 = arith.mulf %24, %27 : vector<8x16xf32>
    %29 = arith.addf %22, %28 : vector<8x16xf32>
    %30 = vector.extract_strided_slice %1 {offsets = [4, 0, 0], sizes = [1, 8, 16], strides = [1, 1, 1]} : vector<10x8x16xf32> to vector<1x8x16xf32>
    %31 = vector.shape_cast %30 : vector<1x8x16xf32> to vector<8x16xf32>
    %32 = vector.extract_strided_slice %2 {offsets = [4, 0, 0], sizes = [1, 1, 1], strides = [1, 1, 1]} : vector<10x1x1xf32> to vector<1x1x1xf32>
    %33 = vector.shape_cast %32 : vector<1x1x1xf32> to vector<1x1xf32>
    %34 = vector.broadcast %33 : vector<1x1xf32> to vector<8x16xf32>
    %35 = arith.mulf %31, %34 : vector<8x16xf32>
    %36 = arith.addf %29, %35 : vector<8x16xf32>
    %37 = vector.extract_strided_slice %1 {offsets = [5, 0, 0], sizes = [1, 8, 16], strides = [1, 1, 1]} : vector<10x8x16xf32> to vector<1x8x16xf32>
    %38 = vector.shape_cast %37 : vector<1x8x16xf32> to vector<8x16xf32>
    %39 = vector.extract_strided_slice %2 {offsets = [5, 0, 0], sizes = [1, 1, 1], strides = [1, 1, 1]} : vector<10x1x1xf32> to vector<1x1x1xf32>
    %40 = vector.shape_cast %39 : vector<1x1x1xf32> to vector<1x1xf32>
    %41 = vector.broadcast %40 : vector<1x1xf32> to vector<8x16xf32>
    %42 = arith.mulf %38, %41 : vector<8x16xf32>
    %43 = arith.addf %36, %42 : vector<8x16xf32>
    %44 = vector.extract_strided_slice %1 {offsets = [6, 0, 0], sizes = [1, 8, 16], strides = [1, 1, 1]} : vector<10x8x16xf32> to vector<1x8x16xf32>
    %45 = vector.shape_cast %44 : vector<1x8x16xf32> to vector<8x16xf32>
    %46 = vector.extract_strided_slice %2 {offsets = [6, 0, 0], sizes = [1, 1, 1], strides = [1, 1, 1]} : vector<10x1x1xf32> to vector<1x1x1xf32>
    %47 = vector.shape_cast %46 : vector<1x1x1xf32> to vector<1x1xf32>
    %48 = vector.broadcast %47 : vector<1x1xf32> to vector<8x16xf32>
    %49 = arith.mulf %45, %48 : vector<8x16xf32>
    %50 = arith.addf %43, %49 : vector<8x16xf32>
    %51 = vector.extract_strided_slice %1 {offsets = [7, 0, 0], sizes = [1, 8, 16], strides = [1, 1, 1]} : vector<10x8x16xf32> to vector<1x8x16xf32>
    %52 = vector.shape_cast %51 : vector<1x8x16xf32> to vector<8x16xf32>
    %53 = vector.extract_strided_slice %2 {offsets = [7, 0, 0], sizes = [1, 1, 1], strides = [1, 1, 1]} : vector<10x1x1xf32> to vector<1x1x1xf32>
    %54 = vector.shape_cast %53 : vector<1x1x1xf32> to vector<1x1xf32>
    %55 = vector.broadcast %54 : vector<1x1xf32> to vector<8x16xf32>
    %56 = arith.mulf %52, %55 : vector<8x16xf32>
    %57 = arith.addf %50, %56 : vector<8x16xf32>
    %58 = vector.extract_strided_slice %1 {offsets = [8, 0, 0], sizes = [1, 8, 16], strides = [1, 1, 1]} : vector<10x8x16xf32> to vector<1x8x16xf32>
    %59 = vector.shape_cast %58 : vector<1x8x16xf32> to vector<8x16xf32>
    %60 = vector.extract_strided_slice %2 {offsets = [8, 0, 0], sizes = [1, 1, 1], strides = [1, 1, 1]} : vector<10x1x1xf32> to vector<1x1x1xf32>
    %61 = vector.shape_cast %60 : vector<1x1x1xf32> to vector<1x1xf32>
    %62 = vector.broadcast %61 : vector<1x1xf32> to vector<8x16xf32>
    %63 = arith.mulf %59, %62 : vector<8x16xf32>
    %64 = arith.addf %57, %63 : vector<8x16xf32>
    %65 = vector.extract_strided_slice %1 {offsets = [9, 0, 0], sizes = [1, 8, 16], strides = [1, 1, 1]} : vector<10x8x16xf32> to vector<1x8x16xf32>
    %66 = vector.shape_cast %65 : vector<1x8x16xf32> to vector<8x16xf32>
    %67 = vector.extract_strided_slice %2 {offsets = [9, 0, 0], sizes = [1, 1, 1], strides = [1, 1, 1]} : vector<10x1x1xf32> to vector<1x1x1xf32>
    %68 = vector.shape_cast %67 : vector<1x1x1xf32> to vector<1x1xf32>
    %69 = vector.broadcast %68 : vector<1x1xf32> to vector<8x16xf32>
    %70 = arith.mulf %66, %69 : vector<8x16xf32>
    %71 = arith.addf %64, %70 : vector<8x16xf32>
    %c0_6 = arith.constant 0 : index
    %c0_7 = arith.constant 0 : index
    %72 = vector.load %arg3[%c0_6, %c0_7] : memref<16x32xf32, #tpu.memory_space<vmem>>, vector<16x32xf32>
    %cst = arith.constant dense<0.000000e+00> : vector<8x32xf32>
    %73 = tpu.matmul %71, %72, %cst {dimension_numbers = #tpu.dot_dimension_numbers<[1], [0], [0], [1], [0, 0, 1, 1], [], []>} : vector<8x16xf32>, vector<16x32xf32>, vector<8x32xf32> -> vector<8x32xf32>
    %74 = math.tanh %73 : vector<8x32xf32>
    %c0_8 = arith.constant 0 : index
    %c0_9 = arith.constant 0 : index
    %75 = vector.load %arg4[%c0_8, %c0_9] : memref<32x128xf32, #tpu.memory_space<vmem>>, vector<32x128xf32>
    %cst_10 = arith.constant dense<0.000000e+00> : vector<8x128xf32>
    %76 = tpu.matmul %74, %75, %cst_10 {dimension_numbers = #tpu.dot_dimension_numbers<[1], [0], [0], [1], [0, 0, 1, 1], [], []>} : vector<8x32xf32>, vector<32x128xf32>, vector<8x128xf32> -> vector<8x128xf32>
    %77 = math.tanh %76 : vector<8x128xf32>
    %c0_11 = arith.constant 0 : index
    %c0_12 = arith.constant 0 : index
    %78 = vector.load %arg5[%c0_11, %c0_12] : memref<128x4xf32, #tpu.memory_space<vmem>>, vector<128x4xf32>
    %cst_13 = arith.constant dense<0.000000e+00> : vector<8x4xf32>
    %79 = tpu.matmul %77, %78, %cst_13 {dimension_numbers = #tpu.dot_dimension_numbers<[1], [0], [0], [1], [0, 0, 1, 1], [], []>} : vector<8x128xf32>, vector<128x4xf32>, vector<8x4xf32> -> vector<8x4xf32>
    %cst_14 = arith.constant dense<0xFF800000> : vector<4xf32>
    %80 = vector.multi_reduction <maximumf>, %79, %cst_14 [0] : vector<8x4xf32> to vector<4xf32>
    %81 = vector.shape_cast %80 : vector<4xf32> to vector<1x4xf32>
    %82 = vector.broadcast %81 : vector<1x4xf32> to vector<8x4xf32>
    %83 = arith.subf %79, %82 : vector<8x4xf32>
    %84 = math.exp %83 : vector<8x4xf32>
    %cst_15 = arith.constant dense<0.000000e+00> : vector<4xf32>
    %85 = vector.multi_reduction <add>, %84, %cst_15 [0] : vector<8x4xf32> to vector<4xf32>
    %86 = vector.shape_cast %85 : vector<4xf32> to vector<1x4xf32>
    %87 = vector.broadcast %86 : vector<1x4xf32> to vector<8x4xf32>
    %88 = arith.divf %84, %87 : vector<8x4xf32>
    %cst_16 = arith.constant dense<0.000000e+00> : vector<4x32xf32>
    %89 = tpu.matmul %88, %74, %cst_16 {dimension_numbers = #tpu.dot_dimension_numbers<[0], [0], [1], [1], [0, 1, 1, 1], [], []>} : vector<8x4xf32>, vector<8x32xf32>, vector<4x32xf32> -> vector<4x32xf32>
    %c0_17 = arith.constant 0 : index
    %c0_18 = arith.constant 0 : index
    %90 = vector.load %arg7[%c0_17, %c0_18] : memref<1x256xf32, #tpu.memory_space<vmem>>, vector<1x256xf32>
    %91 = vector.extract_strided_slice %89 {offsets = [0, 0], sizes = [1, 32], strides = [1, 1]} : vector<4x32xf32> to vector<1x32xf32>
    %c0_19 = arith.constant 0 : index
    %c0_20 = arith.constant 0 : index
    %c0_21 = arith.constant 0 : index
    %92 = vector.load %arg6[%c0_19, %c0_20, %c0_21] : memref<4x32x256xf32, #tpu.memory_space<vmem>>, vector<1x32x256xf32>
    %93 = vector.shape_cast %92 : vector<1x32x256xf32> to vector<32x256xf32>
    %cst_22 = arith.constant dense<0.000000e+00> : vector<1x256xf32>
    %94 = tpu.matmul %91, %93, %cst_22 {dimension_numbers = #tpu.dot_dimension_numbers<[1], [0], [0], [1], [0, 0, 1, 1], [], []>} : vector<1x32xf32>, vector<32x256xf32>, vector<1x256xf32> -> vector<1x256xf32>
    %95 = arith.addf %90, %94 : vector<1x256xf32>
    %96 = vector.extract_strided_slice %89 {offsets = [1, 0], sizes = [1, 32], strides = [1, 1]} : vector<4x32xf32> to vector<1x32xf32>
    %c1 = arith.constant 1 : index
    %c0_23 = arith.constant 0 : index
    %c0_24 = arith.constant 0 : index
    %97 = vector.load %arg6[%c1, %c0_23, %c0_24] : memref<4x32x256xf32, #tpu.memory_space<vmem>>, vector<1x32x256xf32>
    %98 = vector.shape_cast %97 : vector<1x32x256xf32> to vector<32x256xf32>
    %cst_25 = arith.constant dense<0.000000e+00> : vector<1x256xf32>
    %99 = tpu.matmul %96, %98, %cst_25 {dimension_numbers = #tpu.dot_dimension_numbers<[1], [0], [0], [1], [0, 0, 1, 1], [], []>} : vector<1x32xf32>, vector<32x256xf32>, vector<1x256xf32> -> vector<1x256xf32>
    %100 = arith.addf %95, %99 : vector<1x256xf32>
    %101 = vector.extract_strided_slice %89 {offsets = [2, 0], sizes = [1, 32], strides = [1, 1]} : vector<4x32xf32> to vector<1x32xf32>
    %c2 = arith.constant 2 : index
    %c0_26 = arith.constant 0 : index
    %c0_27 = arith.constant 0 : index
    %102 = vector.load %arg6[%c2, %c0_26, %c0_27] : memref<4x32x256xf32, #tpu.memory_space<vmem>>, vector<1x32x256xf32>
    %103 = vector.shape_cast %102 : vector<1x32x256xf32> to vector<32x256xf32>
    %cst_28 = arith.constant dense<0.000000e+00> : vector<1x256xf32>
    %104 = tpu.matmul %101, %103, %cst_28 {dimension_numbers = #tpu.dot_dimension_numbers<[1], [0], [0], [1], [0, 0, 1, 1], [], []>} : vector<1x32xf32>, vector<32x256xf32>, vector<1x256xf32> -> vector<1x256xf32>
    %105 = arith.addf %100, %104 : vector<1x256xf32>
    %106 = vector.extract_strided_slice %89 {offsets = [3, 0], sizes = [1, 32], strides = [1, 1]} : vector<4x32xf32> to vector<1x32xf32>
    %c3 = arith.constant 3 : index
    %c0_29 = arith.constant 0 : index
    %c0_30 = arith.constant 0 : index
    %107 = vector.load %arg6[%c3, %c0_29, %c0_30] : memref<4x32x256xf32, #tpu.memory_space<vmem>>, vector<1x32x256xf32>
    %108 = vector.shape_cast %107 : vector<1x32x256xf32> to vector<32x256xf32>
    %cst_31 = arith.constant dense<0.000000e+00> : vector<1x256xf32>
    %109 = tpu.matmul %106, %108, %cst_31 {dimension_numbers = #tpu.dot_dimension_numbers<[1], [0], [0], [1], [0, 0, 1, 1], [], []>} : vector<1x32xf32>, vector<32x256xf32>, vector<1x256xf32> -> vector<1x256xf32>
    %110 = arith.addf %105, %109 : vector<1x256xf32>
    %cst_32 = arith.constant 0.000000e+00 : f32
    %111 = vector.broadcast %cst_32 : f32 to vector<1x256xf32>
    %112 = arith.maximumf %110, %111 : vector<1x256xf32>
    %c0_33 = arith.constant 0 : index
    %c0_34 = arith.constant 0 : index
    %113 = vector.load %arg8[%c0_33, %c0_34] : memref<256x5xf32, #tpu.memory_space<vmem>>, vector<256x5xf32>
    %cst_35 = arith.constant dense<0.000000e+00> : vector<1x5xf32>
    %114 = tpu.matmul %112, %113, %cst_35 {dimension_numbers = #tpu.dot_dimension_numbers<[1], [0], [0], [1], [0, 0, 1, 1], [], []>} : vector<1x256xf32>, vector<256x5xf32>, vector<1x5xf32> -> vector<1x5xf32>
    %c0_36 = arith.constant 0 : index
    %c0_37 = arith.constant 0 : index
    %115 = vector.load %arg9[%c0_36, %c0_37] : memref<1x5xf32, #tpu.memory_space<vmem>>, vector<1x5xf32>
    %116 = arith.addf %114, %115 : vector<1x5xf32>
    %c0_38 = arith.constant 0 : index
    %c0_39 = arith.constant 0 : index
    %c0_40 = arith.constant 0 : index
    %117 = vector.load %arg10[%c0_38, %c0_39, %c0_40] : memref<1x1x5xf32, #tpu.memory_space<vmem>>, vector<1x1x5xf32>
    %118 = vector.shape_cast %117 : vector<1x1x5xf32> to vector<1x5xf32>
    %119 = vector.shape_cast %116 : vector<1x5xf32> to vector<1x1x5xf32>
    tpu.vector_store %arg10[%c0_38, %c0_39, %c0_40], %119 {strides = array<i32>} : memref<1x1x5xf32, #tpu.memory_space<vmem>>, vector<1x1x5xf32>,
    return
  }
  func.func @transform_0(%arg0: i32) -> (i32, i32, i32, i32) {
    %c0_i32 = arith.constant 0 : i32
    %c0_i32_0 = arith.constant 0 : i32
    %c0_i32_1 = arith.constant 0 : i32
    %c0_i32_2 = arith.constant 0 : i32
    return %arg0, %c0_i32, %c0_i32_0, %c0_i32_1 : i32, i32, i32, i32
  }
  func.func @transform_1(%arg0: i32) -> (i32, i32, i32) {
    %c0_i32 = arith.constant 0 : i32
    %c0_i32_0 = arith.constant 0 : i32
    %c0_i32_1 = arith.constant 0 : i32
    %c0_i32_2 = arith.constant 0 : i32
    return %c0_i32, %c0_i32_0, %c0_i32_1 : i32, i32, i32
  }
  func.func @transform_2(%arg0: i32) -> (i32, i32) {
    %c0_i32 = arith.constant 0 : i32
    %c0_i32_0 = arith.constant 0 : i32
    %c0_i32_1 = arith.constant 0 : i32
    return %c0_i32, %c0_i32_0 : i32, i32
  }
  func.func @transform_3(%arg0: i32) -> (i32, i32) {
    %c0_i32 = arith.constant 0 : i32
    %c0_i32_0 = arith.constant 0 : i32
    %c0_i32_1 = arith.constant 0 : i32
    return %c0_i32, %c0_i32_0 : i32, i32
  }
  func.func @transform_4(%arg0: i32) -> (i32, i32) {
    %c0_i32 = arith.constant 0 : i32
    %c0_i32_0 = arith.constant 0 : i32
    %c0_i32_1 = arith.constant 0 : i32
    return %c0_i32, %c0_i32_0 : i32, i32
  }
  func.func @transform_5(%arg0: i32) -> (i32, i32, i32) {
    %c0_i32 = arith.constant 0 : i32
    %c0_i32_0 = arith.constant 0 : i32
    %c0_i32_1 = arith.constant 0 : i32
    %c0_i32_2 = arith.constant 0 : i32
    return %c0_i32, %c0_i32_0, %c0_i32_1 : i32, i32, i32
  }
  func.func @transform_6(%arg0: i32) -> (i32, i32) {
    %c0_i32 = arith.constant 0 : i32
    %c0_i32_0 = arith.constant 0 : i32
    %c0_i32_1 = arith.constant 0 : i32
    return %c0_i32, %c0_i32_0 : i32, i32
  }
  func.func @transform_7(%arg0: i32) -> (i32, i32) {
    %c0_i32 = arith.constant 0 : i32
    %c0_i32_0 = arith.constant 0 : i32
    %c0_i32_1 = arith.constant 0 : i32
    return %c0_i32, %c0_i32_0 : i32, i32
  }
  func.func @transform_8(%arg0: i32) -> (i32, i32) {
    %c0_i32 = arith.constant 0 : i32
    %c0_i32_0 = arith.constant 0 : i32
    %c0_i32_1 = arith.constant 0 : i32
    return %c0_i32, %c0_i32_0 : i32, i32
  }
  func.func @transform_9(%arg0: i32) -> (i32, i32, i32) {
    %c0_i32 = arith.constant 0 : i32
    %c0_i32_0 = arith.constant 0 : i32
    %c0_i32_1 = arith.constant 0 : i32
    return %arg0, %c0_i32, %c0_i32_0 : i32, i32, i32
  }
}

</mosaic_0001>

<llo_original>
// kernel: tpu_custom_call.1
$region0: #{tpu_custom_call.1}
  #allocation0 [shape = 'u32[]', space=smem, size = 0x4, offset = 0x4, fixed_abs, tag = 'smem constant byte address 0x4 - core index']
  #allocation1 [shape = 'u32[72,128]{1,0:T(1,128)}', space=vmem, size = 0x9000, scoped, tag = 'internal scratch']
  %s0 = inlined_call_operand.hbm [shape: f32[2,10,8,16], index: 0, kind: input, shape index: {}]
  %s1 = inlined_call_operand.vmem [shape: f32[10,1,1], index: 1, kind: input, shape index: {}]
  %s2 = inlined_call_operand.vmem [shape: f32[16,32], index: 2, kind: input, shape index: {}]
  %s3 = inlined_call_operand.vmem [shape: f32[32,128], index: 3, kind: input, shape index: {}]
  %s4 = inlined_call_operand.vmem [shape: f32[128,4], index: 4, kind: input, shape index: {}]
  %s5 = inlined_call_operand.vmem [shape: f32[4,32,256], index: 5, kind: input, shape index: {}]
  %s6 = inlined_call_operand.vmem [shape: f32[1,256], index: 6, kind: input, shape index: {}]
  %s7 = inlined_call_operand.vmem [shape: f32[256,5], index: 7, kind: input, shape index: {}]
  %s8 = inlined_call_operand.vmem [shape: f32[1,5], index: 8, kind: input, shape index: {}]
  %s9 = inlined_call_operand.hbm [shape: f32[2,1,5], index: 9, kind: output, shape index: {}]
  %s10 = sld [smem:[#allocation0]]
  $region73: #{tpu_custom_call.1} parent=0
    _
  %s12 = ssub.s32 1, %s10
  %s13 = scalar_select 0, %s12, %s10
  $region1: #{tpu_custom_call.1} parent=0
    #allocation2 [shape = 'u8[81920]{0}', space=vmem, size = 0x14000, scoped, tag = 'input window, operand 0']
    #allocation3 [shape = 's32[2]{0}', space=sflag, size = 0x8, scoped, tag = 'scoped memory for tpu_custom_call.1']
    #allocation4 [shape = 's32[2]{0}', space=sflag, size = 0x8, scoped, tag = 'scoped memory for tpu_custom_call.1']
    #allocation5 [shape = 'u8[1024]{0}', space=vmem, size = 0x400, scoped, tag = 'output window, operand 0']
    %14 = vsyncpa [#allocation3], 0
    %s15 = scalar_lea.sflag [#allocation3], 1
    %16 = vsyncpa %s15, 0
    %17 = vsyncpa [#allocation4], 0
    %s18 = scalar_lea.sflag [#allocation4], 1
    %19 = vsyncpa %s18, 0
    loop: start=0, step=1, limit=4
    $region2: #{tpu_custom_call.1} parent=1 // loop_pre_header
      _
    $region3: #{tpu_custom_call.1} parent=1 // loop_header
      %s21 = sphi 0, %s25
      %p22 = scmp.ge.s32.totalorder %s21, 4
      %s31 = sphi 0, %s33
      %s34 = sphi 0, %s31
      %s35 = sphi 0, %s34
      %s51 = sphi 0, %s35
      %s55 = sphi 0, %s55
      %s57 = sphi 0, %s55
      %s58 = sphi 0, %s57
      %s72 = sphi 0, %s58
      %s76 = sphi 0, %s76
      %s78 = sphi 0, %s76
      %s79 = sphi 0, %s78
      %s93 = sphi 0, %s79
      %s97 = sphi 0, %s97
      %s99 = sphi 0, %s97
      %s100 = sphi 0, %s99
      %s114 = sphi 0, %s100
      %s118 = sphi 0, %s118
      %s120 = sphi 0, %s118
      %s121 = sphi 0, %s120
      %s135 = sphi 0, %s121
      %s139 = sphi 0, %s139
      %s141 = sphi 0, %s139
      %s142 = sphi 0, %s141
      %s156 = sphi 0, %s142
      %s160 = sphi 0, %s160
      %s162 = sphi 0, %s160
      %s163 = sphi 0, %s162
      %s177 = sphi 0, %s163
      %s181 = sphi 0, %s181
      %s183 = sphi 0, %s181
      %s184 = sphi 0, %s183
      %s198 = sphi 0, %s184
      %s202 = sphi 0, %s202
      %s204 = sphi 0, %s202
      %s205 = sphi 0, %s204
      %s219 = sphi 0, %s205
      %s225 = sphi 0, %s227
      %s228 = sphi 0, %s225
      %s229 = sphi 0, %s228
      %s245 = sphi 0, %s229
    $region4: #{tpu_custom_call.1} parent=1 // loop_header_branch
      %24 = sbr.rel (%p22) target = $region8
    $region5: #{tpu_custom_call.1} parent=1 // loop_body
      %s26 = ssub.s32 %s21, 1
      %s27 = ssub.s32 %s21, 2
      %s28 = sadd.s32 %s21, 1
      %s29 = ssub.s32 %s21, %s28
      %p30 = scmp.eq.s32.totalorder %s29, 0
      %s32 = sadd.s32 %s31, 1
      %s33 = scalar_select %p30, %s31, %s32
      %p36 = pneg %p30
      %p37 = scmp.eq.s32.totalorder %s21, 1
      %p38 = por %p36, %p37
      %p39 = scmp.ne.s32.totalorder %s31, %s34
      %p40 = scmp.eq.s32.totalorder %s21, 0
      %p41 = por %p39, %p40
      %p42 = scmp.ne.s32.totalorder %s31, %s34
      %p43 = scmp.eq.s32.totalorder %s26, 1
      %p44 = por %p42, %p43
      %p45 = scmp.ne.s32.totalorder %s34, %s35
      %p46 = scmp.eq.s32.totalorder %s26, 0
      %p47 = por %p45, %p46
      %p48 = scmp.ne.s32.totalorder %s34, %s35
      %p49 = scmp.eq.s32.totalorder %s27, 1
      %p50 = por %p48, %p49
      %p52 = scmp.ne.s32.totalorder %s35, %s51
      %p53 = scmp.eq.s32.totalorder %s27, 0
      %p54 = por %p52, %p53
      %s56 = sadd.s32 %s55, 1
      %p59 = scmp.eq.s32.totalorder %s21, 1
      %p60 = scmp.ne.s32.totalorder %s55, %s57
      %p61 = scmp.eq.s32.totalorder %s21, 0
      %p62 = por %p60, %p61
      %p63 = scmp.ne.s32.totalorder %s55, %s57
      %p64 = scmp.eq.s32.totalorder %s26, 1
      %p65 = por %p63, %p64
      %p66 = scmp.ne.s32.totalorder %s57, %s58
      %p67 = scmp.eq.s32.totalorder %s26, 0
      %p68 = por %p66, %p67
      %p69 = scmp.ne.s32.totalorder %s57, %s58
      %p70 = scmp.eq.s32.totalorder %s27, 1
      %p71 = por %p69, %p70
      %p73 = scmp.ne.s32.totalorder %s58, %s72
      %p74 = scmp.eq.s32.totalorder %s27, 0
      %p75 = por %p73, %p74
      %s77 = sadd.s32 %s76, 1
      %p80 = scmp.eq.s32.totalorder %s21, 1
      %p81 = scmp.ne.s32.totalorder %s76, %s78
      %p82 = scmp.eq.s32.totalorder %s21, 0
      %p83 = por %p81, %p82
      %p84 = scmp.ne.s32.totalorder %s76, %s78
      %p85 = scmp.eq.s32.totalorder %s26, 1
      %p86 = por %p84, %p85
      %p87 = scmp.ne.s32.totalorder %s78, %s79
      %p88 = scmp.eq.s32.totalorder %s26, 0
      %p89 = por %p87, %p88
      %p90 = scmp.ne.s32.totalorder %s78, %s79
      %p91 = scmp.eq.s32.totalorder %s27, 1
      %p92 = por %p90, %p91
      %p94 = scmp.ne.s32.totalorder %s79, %s93
      %p95 = scmp.eq.s32.totalorder %s27, 0
      %p96 = por %p94, %p95
      %s98 = sadd.s32 %s97, 1
      %p101 = scmp.eq.s32.totalorder %s21, 1
      %p102 = scmp.ne.s32.totalorder %s97, %s99
      %p103 = scmp.eq.s32.totalorder %s21, 0
      %p104 = por %p102, %p103
      %p105 = scmp.ne.s32.totalorder %s97, %s99
      %p106 = scmp.eq.s32.totalorder %s26, 1
      %p107 = por %p105, %p106
      %p108 = scmp.ne.s32.totalorder %s99, %s100
      %p109 = scmp.eq.s32.totalorder %s26, 0
      %p110 = por %p108, %p109
      %p111 = scmp.ne.s32.totalorder %s99, %s100
      %p112 = scmp.eq.s32.totalorder %s27, 1
      %p113 = por %p111, %p112
      %p115 = scmp.ne.s32.totalorder %s100, %s114
      %p116 = scmp.eq.s32.totalorder %s27, 0
      %p117 = por %p115, %p116
      %s119 = sadd.s32 %s118, 1
      %p122 = scmp.eq.s32.totalorder %s21, 1
      %p123 = scmp.ne.s32.totalorder %s118, %s120
      %p124 = scmp.eq.s32.totalorder %s21, 0
      %p125 = por %p123, %p124
      %p126 = scmp.ne.s32.totalorder %s118, %s120
      %p127 = scmp.eq.s32.totalorder %s26, 1
      %p128 = por %p126, %p127
      %p129 = scmp.ne.s32.totalorder %s120, %s121
      %p130 = scmp.eq.s32.totalorder %s26, 0
      %p131 = por %p129, %p130
      %p132 = scmp.ne.s32.totalorder %s120, %s121
      %p133 = scmp.eq.s32.totalorder %s27, 1
      %p134 = por %p132, %p133
      %p136 = scmp.ne.s32.totalorder %s121, %s135
      %p137 = scmp.eq.s32.totalorder %s27, 0
      %p138 = por %p136, %p137
      %s140 = sadd.s32 %s139, 1
      %p143 = scmp.eq.s32.totalorder %s21, 1
      %p144 = scmp.ne.s32.totalorder %s139, %s141
      %p145 = scmp.eq.s32.totalorder %s21, 0
      %p146 = por %p144, %p145
      %p147 = scmp.ne.s32.totalorder %s139, %s141
      %p148 = scmp.eq.s32.totalorder %s26, 1
      %p149 = por %p147, %p148
      %p150 = scmp.ne.s32.totalorder %s141, %s142
      %p151 = scmp.eq.s32.totalorder %s26, 0
      %p152 = por %p150, %p151
      %p153 = scmp.ne.s32.totalorder %s141, %s142
      %p154 = scmp.eq.s32.totalorder %s27, 1
      %p155 = por %p153, %p154
      %p157 = scmp.ne.s32.totalorder %s142, %s156
      %p158 = scmp.eq.s32.totalorder %s27, 0
      %p159 = por %p157, %p158
      %s161 = sadd.s32 %s160, 1
      %p164 = scmp.eq.s32.totalorder %s21, 1
      %p165 = scmp.ne.s32.totalorder %s160, %s162
      %p166 = scmp.eq.s32.totalorder %s21, 0
      %p167 = por %p165, %p166
      %p168 = scmp.ne.s32.totalorder %s160, %s162
      %p169 = scmp.eq.s32.totalorder %s26, 1
      %p170 = por %p168, %p169
      %p171 = scmp.ne.s32.totalorder %s162, %s163
      %p172 = scmp.eq.s32.totalorder %s26, 0
      %p173 = por %p171, %p172
      %p174 = scmp.ne.s32.totalorder %s162, %s163
      %p175 = scmp.eq.s32.totalorder %s27, 1
      %p176 = por %p174, %p175
      %p178 = scmp.ne.s32.totalorder %s163, %s177
      %p179 = scmp.eq.s32.totalorder %s27, 0
      %p180 = por %p178, %p179
      %s182 = sadd.s32 %s181, 1
      %p185 = scmp.eq.s32.totalorder %s21, 1
      %p186 = scmp.ne.s32.totalorder %s181, %s183
      %p187 = scmp.eq.s32.totalorder %s21, 0
      %p188 = por %p186, %p187
      %p189 = scmp.ne.s32.totalorder %s181, %s183
      %p190 = scmp.eq.s32.totalorder %s26, 1
      %p191 = por %p189, %p190
      %p192 = scmp.ne.s32.totalorder %s183, %s184
      %p193 = scmp.eq.s32.totalorder %s26, 0
      %p194 = por %p192, %p193
      %p195 = scmp.ne.s32.totalorder %s183, %s184
      %p196 = scmp.eq.s32.totalorder %s27, 1
      %p197 = por %p195, %p196
      %p199 = scmp.ne.s32.totalorder %s184, %s198
      %p200 = scmp.eq.s32.totalorder %s27, 0
      %p201 = por %p199, %p200
      %s203 = sadd.s32 %s202, 1
      %p206 = scmp.eq.s32.totalorder %s21, 1
      %p207 = scmp.ne.s32.totalorder %s202, %s204
      %p208 = scmp.eq.s32.totalorder %s21, 0
      %p209 = por %p207, %p208
      %p210 = scmp.ne.s32.totalorder %s202, %s204
      %p211 = scmp.eq.s32.totalorder %s26, 1
      %p212 = por %p210, %p211
      %p213 = scmp.ne.s32.totalorder %s204, %s205
      %p214 = scmp.eq.s32.totalorder %s26, 0
      %p215 = por %p213, %p214
      %p216 = scmp.ne.s32.totalorder %s204, %s205
      %p217 = scmp.eq.s32.totalorder %s27, 1
      %p218 = por %p216, %p217
      %p220 = scmp.ne.s32.totalorder %s205, %s219
      %p221 = scmp.eq.s32.totalorder %s27, 0
      %p222 = por %p220, %p221
      %s223 = ssub.s32 %s21, %s28
      %p224 = scmp.eq.s32.totalorder %s223, 0
      %s226 = sadd.s32 %s225, 1
      %s227 = scalar_select %p224, %s225, %s226
      %p230 = pneg %p224
      %p231 = scmp.eq.s32.totalorder %s21, 1
      %p232 = por %p230, %p231
      %p233 = scmp.ne.s32.totalorder %s225, %s228
      %p234 = scmp.eq.s32.totalorder %s21, 0
      %p235 = por %p233, %p234
      %p236 = scmp.ne.s32.totalorder %s225, %s228
      %p237 = scmp.eq.s32.totalorder %s26, 1
      %p238 = por %p236, %p237
      %p239 = scmp.ne.s32.totalorder %s228, %s229
      %p240 = scmp.eq.s32.totalorder %s26, 0
      %p241 = por %p239, %p240
      %p242 = scmp.ne.s32.totalorder %s228, %s229
      %p243 = scmp.eq.s32.totalorder %s27, 1
      %p244 = por %p242, %p243
      %p246 = scmp.ne.s32.totalorder %s229, %s245
      %p247 = scmp.eq.s32.totalorder %s27, 0
      %p248 = por %p246, %p247
      %p249 = scmp.le.s32.totalorder 1, %s21
      %p250 = scmp.lt.s32.totalorder %s21, 3
      %p251 = pnand %p249, %p250
      %p252 = pneg %p251
      // Predicated region
      $region9: #{tpu_custom_call.1} parent=5 // pred_check
        _
      $region10: #{tpu_custom_call.1} parent=5 // pred_check_branch
        %254 = sbr.rel (%p251) target = $region12
      $region11: #{tpu_custom_call.1} parent=5 // pred_region
        %s255 = ssub.s32 %s21, 1
        // Predicated region
        $region13: #{tpu_custom_call.1} parent=11 // pred_check
          %p256 = pneg %p68
        $region14: #{tpu_custom_call.1} parent=11 // pred_check_branch
          %258 = sbr.rel (%p256) target = $region16
        $region15: #{tpu_custom_call.1} parent=11 // pred_region
          _
        $region16: #{tpu_custom_call.1} parent=11 // pred_fallthru
          _
        // Predicated region
        $region17: #{tpu_custom_call.1} parent=11 // pred_check
          %p259 = pneg %p89
        $region18: #{tpu_custom_call.1} parent=11 // pred_check_branch
          %261 = sbr.rel (%p259) target = $region20
        $region19: #{tpu_custom_call.1} parent=11 // pred_region
          _
        $region20: #{tpu_custom_call.1} parent=11 // pred_fallthru
          _
        // Predicated region
        $region21: #{tpu_custom_call.1} parent=11 // pred_check
          %p262 = pneg %p110
        $region22: #{tpu_custom_call.1} parent=11 // pred_check_branch
          %264 = sbr.rel (%p262) target = $region24
        $region23: #{tpu_custom_call.1} parent=11 // pred_region
          _
        $region24: #{tpu_custom_call.1} parent=11 // pred_fallthru
          _
        // Predicated region
        $region25: #{tpu_custom_call.1} parent=11 // pred_check
          %p265 = pneg %p131
        $region26: #{tpu_custom_call.1} parent=11 // pred_check_branch
          %267 = sbr.rel (%p265) target = $region28
        $region27: #{tpu_custom_call.1} parent=11 // pred_region
          _
        $region28: #{tpu_custom_call.1} parent=11 // pred_fallthru
          _
        // Predicated region
        $region29: #{tpu_custom_call.1} parent=11 // pred_check
          %p268 = pneg %p152
        $region30: #{tpu_custom_call.1} parent=11 // pred_check_branch
          %270 = sbr.rel (%p268) target = $region32
        $region31: #{tpu_custom_call.1} parent=11 // pred_region
          _
        $region32: #{tpu_custom_call.1} parent=11 // pred_fallthru
          _
        // Predicated region
        $region33: #{tpu_custom_call.1} parent=11 // pred_check
          %p271 = pneg %p173
        $region34: #{tpu_custom_call.1} parent=11 // pred_check_branch
          %273 = sbr.rel (%p271) target = $region36
        $region35: #{tpu_custom_call.1} parent=11 // pred_region
          _
        $region36: #{tpu_custom_call.1} parent=11 // pred_fallthru
          _
        // Predicated region
        $region37: #{tpu_custom_call.1} parent=11 // pred_check
          %p274 = pneg %p194
        $region38: #{tpu_custom_call.1} parent=11 // pred_check_branch
          %276 = sbr.rel (%p274) target = $region40
        $region39: #{tpu_custom_call.1} parent=11 // pred_region
          _
        $region40: #{tpu_custom_call.1} parent=11 // pred_fallthru
          _
        // Predicated region
        $region41: #{tpu_custom_call.1} parent=11 // pred_check
          %p277 = pneg %p215
        $region42: #{tpu_custom_call.1} parent=11 // pred_check_branch
          %279 = sbr.rel (%p277) target = $region44
        $region43: #{tpu_custom_call.1} parent=11 // pred_region
          _
        $region44: #{tpu_custom_call.1} parent=11 // pred_fallthru
          _
      $region12: #{tpu_custom_call.1} parent=5 // pred_fallthru
        _
      %p280 = scmp.lt.s32.totalorder %s21, 2
      // Predicated region
      $region45: #{tpu_custom_call.1} parent=5 // pred_check
        %p281 = pneg %p280
      $region46: #{tpu_custom_call.1} parent=5 // pred_check_branch
        %283 = sbr.rel (%p281) target = $region48
      $region47: #{tpu_custom_call.1} parent=5 // pred_region
        // Predicated region
        $region49: #{tpu_custom_call.1} parent=47 // pred_check
          %p284 = pneg %p41
        $region50: #{tpu_custom_call.1} parent=47 // pred_check_branch
          %286 = sbr.rel (%p284) target = $region52
        $region51: #{tpu_custom_call.1} parent=47 // pred_region
          %s287 = sand.u32 %s31, 1
          %s288 = scalar_lea.sflag [#allocation3], %s287
          %s289 = sand.u32 %s31, 1
          %s290 = smul.addr %s289, 80
          %s291 = scalar_lea.vmem [#allocation2], %s290
          %293 = vsyncadd %s288, 0
          %s294 = smul.addr %s21, 10
          %s295 = smul.addr %s294, 8
          %s296 = scalar_lea.hbm %s0, %s295
          %s297 = sshll.u32 %s296, 4
          %s298 = int_to_ptr.hbm [resolvable:$true] %s297
          %s299 = sshll.u32 %s291, 4
          %s300 = int_to_ptr.vmem [resolvable:$true] %s299
          %305 = dma.hbm_to_vmem [thread:$0]  %s298, 1280, %s300, %s288, 128, 128, 8
        $region52: #{tpu_custom_call.1} parent=47 // pred_fallthru
          _
      $region48: #{tpu_custom_call.1} parent=5 // pred_fallthru
        _
      %p306 = scmp.le.s32.totalorder 1, %s21
      %p307 = scmp.lt.s32.totalorder %s21, 3
      %p308 = pnand %p306, %p307
      %p309 = pneg %p308
      // Predicated region
      $region53: #{tpu_custom_call.1} parent=5 // pred_check
        _
      $region54: #{tpu_custom_call.1} parent=5 // pred_check_branch
        %311 = sbr.rel (%p308) target = $region56
      $region55: #{tpu_custom_call.1} parent=5 // pred_region
        %s312 = ssub.s32 %s21, 1
        %s313 = sand.u32 %s34, 1
        %s314 = scalar_lea.sflag [#allocation3], %s313
        %s315 = sand.u32 %s34, 1
        %s316 = smul.addr %s315, 80
        %s317 = scalar_lea.vmem [#allocation2], %s316
        // Predicated region
        $region57: #{tpu_custom_call.1} parent=55 // pred_check
          %p318 = pneg %p47
        $region58: #{tpu_custom_call.1} parent=55 // pred_check_branch
          %320 = sbr.rel (%p318) target = $region60
        $region59: #{tpu_custom_call.1} parent=55 // pred_region
          %322 = dma.done %s314, 1280
        $region60: #{tpu_custom_call.1} parent=55 // pred_fallthru
          _
        %s323 = sand.u32 %s34, 1
        %s324 = scalar_lea.sflag [#allocation3], %s323
        %s325 = sand.u32 %s34, 1
        %s326 = smul.addr %s325, 80
        %s327 = scalar_lea.vmem [#allocation2], %s326
        %p328 = pneg %p47
        %p329 = pneg %p44
        %p330 = pneg %p68
        %p331 = pneg %p65
        %p332 = pneg %p89
        %p333 = pneg %p86
        %p334 = pneg %p110
        %p335 = pneg %p107
        %p336 = pneg %p131
        %p337 = pneg %p128
        %p338 = pneg %p152
        %p339 = pneg %p149
        %p340 = pneg %p173
        %p341 = pneg %p170
        %p342 = pneg %p194
        %p343 = pneg %p191
        %p344 = pneg %p215
        %p345 = pneg %p212
        %p346 = pneg %p241
        %p347 = pneg %p238
        %s348 = sand.u32 %s228, 1
        %s349 = scalar_lea.sflag [#allocation4], %s348
        %s350 = sand.u32 %s228, 1
        %s351 = scalar_lea.vmem [#allocation5], %s350
        %v352 = vld [vmem:[%s317] sm:$0xff]
        %v353 = vld [vmem:[%s317 + $0x8] sm:$0xff]
        %v354 = vld [vmem:[%s317 + $0x10] sm:$0xff]
        %v355 = vld [vmem:[%s317 + $0x18] sm:$0xff]
        %v356 = vld [vmem:[%s317 + $0x20] sm:$0xff]
        %v357 = vld [vmem:[%s317 + $0x28] sm:$0xff]
        %v358 = vld [vmem:[%s317 + $0x30] sm:$0xff]
        %v359 = vld [vmem:[%s317 + $0x38] sm:$0xff]
        %v360 = vld [vmem:[%s317 + $0x40] sm:$0xff]
        %v361 = vld [vmem:[%s317 + $0x48] sm:$0xff]
        %v362 = vld [vmem:[%s1] sm:$0x1]
        %v363 = vld [vmem:[%s1 + $0x1] sm:$0x1]
        %v364 = vld [vmem:[%s1 + $0x2] sm:$0x1]
        %v365 = vld [vmem:[%s1 + $0x3] sm:$0x1]
        %v366 = vld [vmem:[%s1 + $0x4] sm:$0x1]
        %v367 = vld [vmem:[%s1 + $0x5] sm:$0x1]
        %v368 = vld [vmem:[%s1 + $0x6] sm:$0x1]
        %v369 = vld [vmem:[%s1 + $0x7] sm:$0x1]
        %v370 = vld [vmem:[%s1 + $0x8] sm:$0x1]
        %v371 = vld [vmem:[%s1 + $0x9] sm:$0x1]
        %v373 = vperm.slane %v362, 0
        %374 = vset.pattern.permute.xlu0 0
        %375 = vperm.xlu0 %374, %v373
        %v376 = vpop.permute.xlu0 %375
        %v378 = vmul.f32 %v352, %v376
        %v380 = vperm.slane %v363, 0
        %381 = vset.pattern.permute.xlu0 0
        %382 = vperm.xlu0 %381, %v380
        %v383 = vpop.permute.xlu0 %382
        %v385 = vmul.f32 %v353, %v383
        %v386 = vadd.f32 %v378, %v385
        %v388 = vperm.slane %v364, 0
        %389 = vset.pattern.permute.xlu0 0
        %390 = vperm.xlu0 %389, %v388
        %v391 = vpop.permute.xlu0 %390
        %v393 = vmul.f32 %v354, %v391
        %v394 = vadd.f32 %v386, %v393
        %v396 = vperm.slane %v365, 0
        %397 = vset.pattern.permute.xlu0 0
        %398 = vperm.xlu0 %397, %v396
        %v399 = vpop.permute.xlu0 %398
        %v401 = vmul.f32 %v355, %v399
        %v402 = vadd.f32 %v394, %v401
        %v404 = vperm.slane %v366, 0
        %405 = vset.pattern.permute.xlu0 0
        %406 = vperm.xlu0 %405, %v404
        %v407 = vpop.permute.xlu0 %406
        %v409 = vmul.f32 %v356, %v407
        %v410 = vadd.f32 %v402, %v409
        %v412 = vperm.slane %v367, 0
        %413 = vset.pattern.permute.xlu0 0
        %414 = vperm.xlu0 %413, %v412
        %v415 = vpop.permute.xlu0 %414
        %v417 = vmul.f32 %v357, %v415
        %v418 = vadd.f32 %v410, %v417
        %v420 = vperm.slane %v368, 0
        %421 = vset.pattern.permute.xlu0 0
        %422 = vperm.xlu0 %421, %v420
        %v423 = vpop.permute.xlu0 %422
        %v425 = vmul.f32 %v358, %v423
        %v426 = vadd.f32 %v418, %v425
        %v428 = vperm.slane %v369, 0
        %429 = vset.pattern.permute.xlu0 0
        %430 = vperm.xlu0 %429, %v428
        %v431 = vpop.permute.xlu0 %430
        %v433 = vmul.f32 %v359, %v431
        %v434 = vadd.f32 %v426, %v433
        %v436 = vperm.slane %v370, 0
        %437 = vset.pattern.permute.xlu0 0
        %438 = vperm.xlu0 %437, %v436
        %v439 = vpop.permute.xlu0 %438
        %v441 = vmul.f32 %v360, %v439
        %v442 = vadd.f32 %v434, %v441
        %v444 = vperm.slane %v371, 0
        %445 = vset.pattern.permute.xlu0 0
        %446 = vperm.xlu0 %445, %v444
        %v447 = vpop.permute.xlu0 %446
        %v449 = vmul.f32 %v361, %v447
        %v450 = vadd.f32 %v442, %v449
        %v451 = vld [vmem:[%s2] sm:$0xff]
        %v452 = vld [vmem:[%s2 + $0x8] sm:$0xff]
        %vm453 = vcmask 130048
        %v455 = vsel %vm453, %v450, 0
        %457 = vmatpush.msra.mxu0 0.0
        %458 = vmatpush.msra.mxu0 0.0
        %459 = vmatpush.msra.mxu0 0.0
        %460 = vmatpush.msra.mxu0 0.0
        %461 = vmatpush.msra.mxu0 0.0
        %462 = vmatpush.msra.mxu0 0.0
        %463 = vmatpush.msra.mxu0 0.0
        %464 = vmatpush.msra.mxu0 0.0
        %465 = vmatpush.msra.mxu0 0.0
        %466 = vmatpush.msra.mxu0 0.0
        %467 = vmatpush.msra.mxu0 0.0
        %468 = vmatpush.msra.mxu0 0.0
        %469 = vmatpush.msra.mxu0 0.0
        %470 = vmatpush.msra.mxu0 0.0
        %471 = vmatpush.msra.mxu0 %v452
        %472 = vmatpush.msra.mxu0 %v451
        %473 = vmatmul.f32.gmra.mxu0 %v455
        %v474 = vpop.f32.mrf.mxu0
        %v475 = vadd.f32 0.0, %v474
        %476 = vdwg.mxu0
        %v477 = vtanh.pop %v475
        %v478 = vld [vmem:[%s3] sm:$0xff]
        %v479 = vld [vmem:[%s3 + $0x8] sm:$0xff]
        %v480 = vld [vmem:[%s3 + $0x10] sm:$0xff]
        %v481 = vld [vmem:[%s3 + $0x18] sm:$0xff]
        %vm482 = vcmask 261120
        %v484 = vsel %vm482, %v477, 0
        %486 = vmatpush.msra.mxu0 0.0
        %487 = vmatpush.msra.mxu0 0.0
        %488 = vmatpush.msra.mxu0 0.0
        %489 = vmatpush.msra.mxu0 0.0
        %490 = vmatpush.msra.mxu0 0.0
        %491 = vmatpush.msra.mxu0 0.0
        %492 = vmatpush.msra.mxu0 0.0
        %493 = vmatpush.msra.mxu0 0.0
        %494 = vmatpush.msra.mxu0 0.0
        %495 = vmatpush.msra.mxu0 0.0
        %496 = vmatpush.msra.mxu0 0.0
        %497 = vmatpush.msra.mxu0 0.0
        %498 = vmatpush.msra.mxu0 %v481
        %499 = vmatpush.msra.mxu0 %v480
        %500 = vmatpush.msra.mxu0 %v479
        %501 = vmatpush.msra.mxu0 %v478
        %502 = vmatmul.f32.gmra.mxu0 %v484
        %v503 = vpop.f32.mrf.mxu0
        %v504 = vadd.f32 0.0, %v503
        %505 = vdwg.mxu0
        %v506 = vtanh.pop %v504
        %v507 = vld [vmem:[%s4] sm:$0xff]
        %v508 = vld [vmem:[%s4 + $0x8] sm:$0xff]
        %v509 = vld [vmem:[%s4 + $0x10] sm:$0xff]
        %v510 = vld [vmem:[%s4 + $0x18] sm:$0xff]
        %v511 = vld [vmem:[%s4 + $0x20] sm:$0xff]
        %v512 = vld [vmem:[%s4 + $0x28] sm:$0xff]
        %v513 = vld [vmem:[%s4 + $0x30] sm:$0xff]
        %v514 = vld [vmem:[%s4 + $0x38] sm:$0xff]
        %v515 = vld [vmem:[%s4 + $0x40] sm:$0xff]
        %v516 = vld [vmem:[%s4 + $0x48] sm:$0xff]
        %v517 = vld [vmem:[%s4 + $0x50] sm:$0xff]
        %v518 = vld [vmem:[%s4 + $0x58] sm:$0xff]
        %v519 = vld [vmem:[%s4 + $0x60] sm:$0xff]
        %v520 = vld [vmem:[%s4 + $0x68] sm:$0xff]
        %v521 = vld [vmem:[%s4 + $0x70] sm:$0xff]
        %v522 = vld [vmem:[%s4 + $0x78] sm:$0xff]
        %523 = vmatpush.msra.mxu0 %v522
        %524 = vmatpush.msra.mxu0 %v521
        %525 = vmatpush.msra.mxu0 %v520
        %526 = vmatpush.msra.mxu0 %v519
        %527 = vmatpush.msra.mxu0 %v518
        %528 = vmatpush.msra.mxu0 %v517
        %529 = vmatpush.msra.mxu0 %v516
        %530 = vmatpush.msra.mxu0 %v515
        %531 = vmatpush.msra.mxu0 %v514
        %532 = vmatpush.msra.mxu0 %v513
        %533 = vmatpush.msra.mxu0 %v512
        %534 = vmatpush.msra.mxu0 %v511
        %535 = vmatpush.msra.mxu0 %v510
        %536 = vmatpush.msra.mxu0 %v509
        %537 = vmatpush.msra.mxu0 %v508
        %538 = vmatpush.msra.mxu0 %v507
        %539 = vmatmul.f32.gmra.mxu0 %v506
        %v540 = vpop.f32.mrf.mxu0
        %v541 = vadd.f32 0.0, %v540
        %542 = vdwg.mxu0
        %vm543 = vcmask 31744
        %v544 = vsel %vm543, %v541, -inf
        %v545 = vrot.slane %v544, 4
        %v546 = vmax.f32 %v544, %v545
        %v547 = vrot.slane %v546, 2
        %v548 = vmax.f32 %v546, %v547
        %v549 = vrot.slane %v548, 1
        %v550 = vmax.f32 %v548, %v549
        %v551 = vsub.f32 %v541, %v550
        %v552 = vmul.f32 %v551, 1.442695
        %v553 = vpow.pop %v552
        %v554 = vsel %vm543, %v553, 0.0
        %v555 = vrot.slane %v554, 4
        %v556 = vadd.f32 %v554, %v555
        %v557 = vrot.slane %v556, 2
        %v558 = vadd.f32 %v556, %v557
        %v559 = vrot.slane %v558, 1
        %v560 = vadd.f32 %v558, %v559
        %v561 = vrcp.pop %v560
        %v562 = vmul.f32 %v560, %v561
        %v563 = vsub.f32 1.0, %v562
        %v564 = vmul.f32 %v561, %v563
        %v565 = vadd.f32 %v561, %v564
        %vm566 = vweird.f32 %v560
        %vm567 = vweird.f32 %v561
        %vm568 = vmor %vm566, %vm567
        %v569 = vsel %vm568, %v561, %v565
        %v570 = vand.u32 2147483647, %v560
        %vm571 = vcmp.eq.f32.partialorder %v570, 8.507059e+37
        %v572 = vand.u32 %v560, 2147483648
        %v573 = vor.u32 1.1754944e-38, %v572
        %v574 = vsel %vm571, %v573, %v569
        %v575 = vmul.f32 %v553, %v574
        %576 = vxpose.xlu0.b32.start [1/16] %v575, 128
        %577 = vxpose.xlu0.b32.cont [2/16] 0.0, 128
        %578 = vxpose.xlu0.b32.cont [3/16] 0.0, 128
        %579 = vxpose.xlu0.b32.cont [4/16] 0.0, 128
        %580 = vxpose.xlu0.b32.cont [5/16] 0.0, 128
        %581 = vxpose.xlu0.b32.cont [6/16] 0.0, 128
        %582 = vxpose.xlu0.b32.cont [7/16] 0.0, 128
        %583 = vxpose.xlu0.b32.cont [8/16] 0.0, 128
        %584 = vxpose.xlu0.b32.cont [9/16] 0.0, 128
        %585 = vxpose.xlu0.b32.cont [10/16] 0.0, 128
        %586 = vxpose.xlu0.b32.cont [11/16] 0.0, 128
        %587 = vxpose.xlu0.b32.cont [12/16] 0.0, 128
        %588 = vxpose.xlu0.b32.cont [13/16] 0.0, 128
        %589 = vxpose.xlu0.b32.cont [14/16] 0.0, 128
        %590 = vxpose.xlu0.b32.cont [15/16] 0.0, 128
        %591 = vxpose.xlu0.b32.end [16/16] 0.0, 128
        %v592 = vpop.trf.xlu0
        %v593 = vpop.trf.xlu0
        %v594 = vpop.trf.xlu0
        %v595 = vpop.trf.xlu0
        %v596 = vpop.trf.xlu0
        %v597 = vpop.trf.xlu0
        %v598 = vpop.trf.xlu0
        %v599 = vpop.trf.xlu0
        %v600 = vpop.trf.xlu0
        %v601 = vpop.trf.xlu0
        %v602 = vpop.trf.xlu0
        %v603 = vpop.trf.xlu0
        %v604 = vpop.trf.xlu0
        %v605 = vpop.trf.xlu0
        %v606 = vpop.trf.xlu0
        %v607 = vpop.trf.xlu0
        %vm608 = vcmask 64512
        %v610 = vsel %vm608, %v592, 0
        %612 = vmatpush.msra.mxu0 0.0
        %613 = vmatpush.msra.mxu0 0.0
        %614 = vmatpush.msra.mxu0 0.0
        %615 = vmatpush.msra.mxu0 0.0
        %616 = vmatpush.msra.mxu0 0.0
        %617 = vmatpush.msra.mxu0 0.0
        %618 = vmatpush.msra.mxu0 0.0
        %619 = vmatpush.msra.mxu0 0.0
        %620 = vmatpush.msra.mxu0 0.0
        %621 = vmatpush.msra.mxu0 0.0
        %622 = vmatpush.msra.mxu0 0.0
        %623 = vmatpush.msra.mxu0 0.0
        %624 = vmatpush.msra.mxu0 0.0
        %625 = vmatpush.msra.mxu0 0.0
        %626 = vmatpush.msra.mxu0 0.0
        %627 = vmatpush.msra.mxu0 %v477
        %628 = vmatmul.f32.gmra.mxu0 %v610
        %v629 = vpop.f32.mrf.mxu0
        %v630 = vadd.f32 0.0, %v629
        %631 = vdwg.mxu0
        %v632 = vld [vmem:[%s6] sm:$0x3]
        %v633 = vld [vmem:[%s5] sm:$0xff]
        %v634 = vld [vmem:[%s5 + $0x8] sm:$0xff]
        %v635 = vld [vmem:[%s5 + $0x10] sm:$0xff]
        %v636 = vld [vmem:[%s5 + $0x18] sm:$0xff]
        %v637 = vld [vmem:[%s5 + $0x20] sm:$0xff]
        %v638 = vld [vmem:[%s5 + $0x28] sm:$0xff]
        %v639 = vld [vmem:[%s5 + $0x30] sm:$0xff]
        %v640 = vld [vmem:[%s5 + $0x38] sm:$0xff]
        %v642 = vsel %vm482, %v630, 0
        %644 = vmatpush.msra.mxu0 0.0
        %645 = vmatpush.msra.mxu0 0.0
        %646 = vmatpush.msra.mxu0 0.0
        %647 = vmatpush.msra.mxu0 0.0
        %648 = vmatpush.msra.mxu0 0.0
        %649 = vmatpush.msra.mxu0 0.0
        %650 = vmatpush.msra.mxu0 0.0
        %651 = vmatpush.msra.mxu0 0.0
        %652 = vmatpush.msra.mxu0 0.0
        %653 = vmatpush.msra.mxu0 0.0
        %654 = vmatpush.msra.mxu0 0.0
        %655 = vmatpush.msra.mxu0 0.0
        %656 = vmatpush.msra.mxu0 %v639
        %657 = vmatpush.msra.mxu0 %v637
        %658 = vmatpush.msra.mxu0 %v635
        %659 = vmatpush.msra.mxu0 %v633
        %660 = vmatmul.f32.gmra.mxu0 %v642
        %v661 = vpop.f32.mrf.mxu0
        %v662 = vadd.f32 0.0, %v661
        %663 = vdwg.mxu0
        %664 = vmatpush.msra.mxu0 0.0
        %665 = vmatpush.msra.mxu0 0.0
        %666 = vmatpush.msra.mxu0 0.0
        %667 = vmatpush.msra.mxu0 0.0
        %668 = vmatpush.msra.mxu0 0.0
        %669 = vmatpush.msra.mxu0 0.0
        %670 = vmatpush.msra.mxu0 0.0
        %671 = vmatpush.msra.mxu0 0.0
        %672 = vmatpush.msra.mxu0 0.0
        %673 = vmatpush.msra.mxu0 0.0
        %674 = vmatpush.msra.mxu0 0.0
        %675 = vmatpush.msra.mxu0 0.0
        %676 = vmatpush.msra.mxu0 %v640
        %677 = vmatpush.msra.mxu0 %v638
        %678 = vmatpush.msra.mxu0 %v636
        %679 = vmatpush.msra.mxu0 %v634
        %680 = vmatmul.f32.gmra.mxu0 %v642
        %v681 = vpop.f32.mrf.mxu0
        %v682 = vadd.f32 0.0, %v681
        %683 = vdwg.mxu0
        %v686 = vrot.slane %v682, 7
        %vm687 = vcmask 1040384
        %v688 = vsel %vm687, %v662, %v686
        %v690 = vadd.f32 %v632, %v688
        %s691 = scalar_lea.vmem %s5, 64
        %v692 = vld [vmem:[%s691] sm:$0xff]
        %v693 = vld [vmem:[%s691 + $0x8] sm:$0xff]
        %v694 = vld [vmem:[%s691 + $0x10] sm:$0xff]
        %v695 = vld [vmem:[%s691 + $0x18] sm:$0xff]
        %v696 = vld [vmem:[%s691 + $0x20] sm:$0xff]
        %v697 = vld [vmem:[%s691 + $0x28] sm:$0xff]
        %v698 = vld [vmem:[%s691 + $0x30] sm:$0xff]
        %v699 = vld [vmem:[%s691 + $0x38] sm:$0xff]
        %v700 = vrot.slane %v630, 1
        %v701 = vsel %vm482, %v700, 0
        %703 = vmatpush.msra.mxu0 0.0
        %704 = vmatpush.msra.mxu0 0.0
        %705 = vmatpush.msra.mxu0 0.0
        %706 = vmatpush.msra.mxu0 0.0
        %707 = vmatpush.msra.mxu0 0.0
        %708 = vmatpush.msra.mxu0 0.0
        %709 = vmatpush.msra.mxu0 0.0
        %710 = vmatpush.msra.mxu0 0.0
        %711 = vmatpush.msra.mxu0 0.0
        %712 = vmatpush.msra.mxu0 0.0
        %713 = vmatpush.msra.mxu0 0.0
        %714 = vmatpush.msra.mxu0 0.0
        %715 = vmatpush.msra.mxu0 %v698
        %716 = vmatpush.msra.mxu0 %v696
        %717 = vmatpush.msra.mxu0 %v694
        %718 = vmatpush.msra.mxu0 %v692
        %719 = vmatmul.f32.gmra.mxu0 %v701
        %v720 = vpop.f32.mrf.mxu0
        %v721 = vadd.f32 0.0, %v720
        %722 = vdwg.mxu0
        %723 = vmatpush.msra.mxu0 0.0
        %724 = vmatpush.msra.mxu0 0.0
        %725 = vmatpush.msra.mxu0 0.0
        %726 = vmatpush.msra.mxu0 0.0
        %727 = vmatpush.msra.mxu0 0.0
        %728 = vmatpush.msra.mxu0 0.0
        %729 = vmatpush.msra.mxu0 0.0
        %730 = vmatpush.msra.mxu0 0.0
        %731 = vmatpush.msra.mxu0 0.0
        %732 = vmatpush.msra.mxu0 0.0
        %733 = vmatpush.msra.mxu0 0.0
        %734 = vmatpush.msra.mxu0 0.0
        %735 = vmatpush.msra.mxu0 %v699
        %736 = vmatpush.msra.mxu0 %v697
        %737 = vmatpush.msra.mxu0 %v695
        %738 = vmatpush.msra.mxu0 %v693
        %739 = vmatmul.f32.gmra.mxu0 %v701
        %v740 = vpop.f32.mrf.mxu0
        %v741 = vadd.f32 0.0, %v740
        %742 = vdwg.mxu0
        %v745 = vrot.slane %v741, 7
        %v746 = vsel %vm687, %v721, %v745
        %v748 = vadd.f32 %v690, %v746
        %s749 = scalar_lea.vmem %s5, 128
        %v750 = vld [vmem:[%s749] sm:$0xff]
        %v751 = vld [vmem:[%s749 + $0x8] sm:$0xff]
        %v752 = vld [vmem:[%s749 + $0x10] sm:$0xff]
        %v753 = vld [vmem:[%s749 + $0x18] sm:$0xff]
        %v754 = vld [vmem:[%s749 + $0x20] sm:$0xff]
        %v755 = vld [vmem:[%s749 + $0x28] sm:$0xff]
        %v756 = vld [vmem:[%s749 + $0x30] sm:$0xff]
        %v757 = vld [vmem:[%s749 + $0x38] sm:$0xff]
        %v758 = vrot.slane %v630, 2
        %v759 = vsel %vm482, %v758, 0
        %761 = vmatpush.msra.mxu0 0.0
        %762 = vmatpush.msra.mxu0 0.0
        %763 = vmatpush.msra.mxu0 0.0
        %764 = vmatpush.msra.mxu0 0.0
        %765 = vmatpush.msra.mxu0 0.0
        %766 = vmatpush.msra.mxu0 0.0
        %767 = vmatpush.msra.mxu0 0.0
        %768 = vmatpush.msra.mxu0 0.0
        %769 = vmatpush.msra.mxu0 0.0
        %770 = vmatpush.msra.mxu0 0.0
        %771 = vmatpush.msra.mxu0 0.0
        %772 = vmatpush.msra.mxu0 0.0
        %773 = vmatpush.msra.mxu0 %v756
        %774 = vmatpush.msra.mxu0 %v754
        %775 = vmatpush.msra.mxu0 %v752
        %776 = vmatpush.msra.mxu0 %v750
        %777 = vmatmul.f32.gmra.mxu0 %v759
        %v778 = vpop.f32.mrf.mxu0
        %v779 = vadd.f32 0.0, %v778
        %780 = vdwg.mxu0
        %781 = vmatpush.msra.mxu0 0.0
        %782 = vmatpush.msra.mxu0 0.0
        %783 = vmatpush.msra.mxu0 0.0
        %784 = vmatpush.msra.mxu0 0.0
        %785 = vmatpush.msra.mxu0 0.0
        %786 = vmatpush.msra.mxu0 0.0
        %787 = vmatpush.msra.mxu0 0.0
        %788 = vmatpush.msra.mxu0 0.0
        %789 = vmatpush.msra.mxu0 0.0
        %790 = vmatpush.msra.mxu0 0.0
        %791 = vmatpush.msra.mxu0 0.0
        %792 = vmatpush.msra.mxu0 0.0
        %793 = vmatpush.msra.mxu0 %v757
        %794 = vmatpush.msra.mxu0 %v755
        %795 = vmatpush.msra.mxu0 %v753
        %796 = vmatpush.msra.mxu0 %v751
        %797 = vmatmul.f32.gmra.mxu0 %v759
        %v798 = vpop.f32.mrf.mxu0
        %v799 = vadd.f32 0.0, %v798
        %800 = vdwg.mxu0
        %v803 = vrot.slane %v799, 7
        %v804 = vsel %vm687, %v779, %v803
        %v806 = vadd.f32 %v748, %v804
        %s807 = scalar_lea.vmem %s5, 192
        %v808 = vld [vmem:[%s807] sm:$0xff]
        %v809 = vld [vmem:[%s807 + $0x8] sm:$0xff]
        %v810 = vld [vmem:[%s807 + $0x10] sm:$0xff]
        %v811 = vld [vmem:[%s807 + $0x18] sm:$0xff]
        %v812 = vld [vmem:[%s807 + $0x20] sm:$0xff]
        %v813 = vld [vmem:[%s807 + $0x28] sm:$0xff]
        %v814 = vld [vmem:[%s807 + $0x30] sm:$0xff]
        %v815 = vld [vmem:[%s807 + $0x38] sm:$0xff]
        %v816 = vrot.slane %v630, 3
        %v817 = vsel %vm482, %v816, 0
        %819 = vmatpush.msra.mxu0 0.0
        %820 = vmatpush.msra.mxu0 0.0
        %821 = vmatpush.msra.mxu0 0.0
        %822 = vmatpush.msra.mxu0 0.0
        %823 = vmatpush.msra.mxu0 0.0
        %824 = vmatpush.msra.mxu0 0.0
        %825 = vmatpush.msra.mxu0 0.0
        %826 = vmatpush.msra.mxu0 0.0
        %827 = vmatpush.msra.mxu0 0.0
        %828 = vmatpush.msra.mxu0 0.0
        %829 = vmatpush.msra.mxu0 0.0
        %830 = vmatpush.msra.mxu0 0.0
        %831 = vmatpush.msra.mxu0 %v814
        %832 = vmatpush.msra.mxu0 %v812
        %833 = vmatpush.msra.mxu0 %v810
        %834 = vmatpush.msra.mxu0 %v808
        %835 = vmatmul.f32.gmra.mxu0 %v817
        %v836 = vpop.f32.mrf.mxu0
        %v837 = vadd.f32 0.0, %v836
        %838 = vdwg.mxu0
        %839 = vmatpush.msra.mxu0 0.0
        %840 = vmatpush.msra.mxu0 0.0
        %841 = vmatpush.msra.mxu0 0.0
        %842 = vmatpush.msra.mxu0 0.0
        %843 = vmatpush.msra.mxu0 0.0
        %844 = vmatpush.msra.mxu0 0.0
        %845 = vmatpush.msra.mxu0 0.0
        %846 = vmatpush.msra.mxu0 0.0
        %847 = vmatpush.msra.mxu0 0.0
        %848 = vmatpush.msra.mxu0 0.0
        %849 = vmatpush.msra.mxu0 0.0
        %850 = vmatpush.msra.mxu0 0.0
        %851 = vmatpush.msra.mxu0 %v815
        %852 = vmatpush.msra.mxu0 %v813
        %853 = vmatpush.msra.mxu0 %v811
        %854 = vmatpush.msra.mxu0 %v809
        %855 = vmatmul.f32.gmra.mxu0 %v817
        %v856 = vpop.f32.mrf.mxu0
        %v857 = vadd.f32 0.0, %v856
        %858 = vdwg.mxu0
        %v861 = vrot.slane %v857, 7
        %v862 = vsel %vm687, %v837, %v861
        %v864 = vadd.f32 %v806, %v862
        %v865 = vmax.f32 %v864, 0.0
        %v866 = vld [vmem:[%s7] sm:$0xff]
        %v867 = vld [vmem:[%s7 + $0x8] sm:$0xff]
        %v868 = vld [vmem:[%s7 + $0x10] sm:$0xff]
        %v869 = vld [vmem:[%s7 + $0x18] sm:$0xff]
        %v870 = vld [vmem:[%s7 + $0x20] sm:$0xff]
        %v871 = vld [vmem:[%s7 + $0x28] sm:$0xff]
        %v872 = vld [vmem:[%s7 + $0x30] sm:$0xff]
        %v873 = vld [vmem:[%s7 + $0x38] sm:$0xff]
        %v874 = vld [vmem:[%s7 + $0x40] sm:$0xff]
        %v875 = vld [vmem:[%s7 + $0x48] sm:$0xff]
        %v876 = vld [vmem:[%s7 + $0x50] sm:$0xff]
        %v877 = vld [vmem:[%s7 + $0x58] sm:$0xff]
        %v878 = vld [vmem:[%s7 + $0x60] sm:$0xff]
        %v879 = vld [vmem:[%s7 + $0x68] sm:$0xff]
        %v880 = vld [vmem:[%s7 + $0x70] sm:$0xff]
        %v881 = vld [vmem:[%s7 + $0x78] sm:$0xff]
        %v882 = vld [vmem:[%s7 + $0x80] sm:$0xff]
        %v883 = vld [vmem:[%s7 + $0x88] sm:$0xff]
        %v884 = vld [vmem:[%s7 + $0x90] sm:$0xff]
        %v885 = vld [vmem:[%s7 + $0x98] sm:$0xff]
        %v886 = vld [vmem:[%s7 + $0xa0] sm:$0xff]
        %v887 = vld [vmem:[%s7 + $0xa8] sm:$0xff]
        %v888 = vld [vmem:[%s7 + $0xb0] sm:$0xff]
        %v889 = vld [vmem:[%s7 + $0xb8] sm:$0xff]
        %v890 = vld [vmem:[%s7 + $0xc0] sm:$0xff]
        %v891 = vld [vmem:[%s7 + $0xc8] sm:$0xff]
        %v892 = vld [vmem:[%s7 + $0xd0] sm:$0xff]
        %v893 = vld [vmem:[%s7 + $0xd8] sm:$0xff]
        %v894 = vld [vmem:[%s7 + $0xe0] sm:$0xff]
        %v895 = vld [vmem:[%s7 + $0xe8] sm:$0xff]
        %v896 = vld [vmem:[%s7 + $0xf0] sm:$0xff]
        %v897 = vld [vmem:[%s7 + $0xf8] sm:$0xff]
        %v898 = vld [vmem:[%s8] sm:$0x1]
        %v900 = vperm.slane %v865, 0
        %v901 = vperm.slane %v865, 1
        %904 = vmatpush.msra.mxu0 %v881
        %905 = vmatpush.msra.mxu0 %v880
        %906 = vmatpush.msra.mxu0 %v879
        %907 = vmatpush.msra.mxu0 %v878
        %908 = vmatpush.msra.mxu0 %v877
        %909 = vmatpush.msra.mxu0 %v876
        %910 = vmatpush.msra.mxu0 %v875
        %911 = vmatpush.msra.mxu0 %v874
        %912 = vmatpush.msra.mxu0 %v873
        %913 = vmatpush.msra.mxu0 %v872
        %914 = vmatpush.msra.mxu0 %v871
        %915 = vmatpush.msra.mxu0 %v870
        %916 = vmatpush.msra.mxu0 %v869
        %917 = vmatpush.msra.mxu0 %v868
        %918 = vmatpush.msra.mxu0 %v867
        %919 = vmatpush.msra.mxu0 %v866
        %920 = vmatmul.f32.gmra.mxu0 %v900
        %v921 = vpop.f32.mrf.mxu0
        %v922 = vadd.f32 %v898, %v921
        %923 = vdwg.mxu0
        %924 = vmatpush.msra.mxu0 %v897
        %925 = vmatpush.msra.mxu0 %v896
        %926 = vmatpush.msra.mxu0 %v895
        %927 = vmatpush.msra.mxu0 %v894
        %928 = vmatpush.msra.mxu0 %v893
        %929 = vmatpush.msra.mxu0 %v892
        %930 = vmatpush.msra.mxu0 %v891
        %931 = vmatpush.msra.mxu0 %v890
        %932 = vmatpush.msra.mxu0 %v889
        %933 = vmatpush.msra.mxu0 %v888
        %934 = vmatpush.msra.mxu0 %v887
        %935 = vmatpush.msra.mxu0 %v886
        %936 = vmatpush.msra.mxu0 %v885
        %937 = vmatpush.msra.mxu0 %v884
        %938 = vmatpush.msra.mxu0 %v883
        %939 = vmatpush.msra.mxu0 %v882
        %940 = vmatmul.f32.gmra.mxu0 %v901
        %v941 = vpop.f32.mrf.mxu0
        %v942 = vadd.f32 %v922, %v941
        %943 = vdwg.mxu0
        %vm944 = vcmask 32768
        %945 = vst.msk [vmem:[%s351] sm:$0x1] %vm944, %v942
        %s946 = sand.u32 %s228, 1
        %s947 = scalar_lea.sflag [#allocation4], %s946
        %s948 = sand.u32 %s228, 1
        %s949 = scalar_lea.vmem [#allocation5], %s948
        // Predicated region
        $region61: #{tpu_custom_call.1} parent=55 // pred_check
          %p950 = pneg %p238
        $region62: #{tpu_custom_call.1} parent=55 // pred_check_branch
          %952 = sbr.rel (%p950) target = $region64
        $region63: #{tpu_custom_call.1} parent=55 // pred_region
          %954 = vsyncadd %s947, 0
          %s955 = scalar_lea.hbm %s9, %s26
          %s957 = sshll.u32 %s949, 4
          %s958 = int_to_ptr.vmem [resolvable:$true] %s957
          %s959 = sshll.u32 %s955, 4
          %s960 = int_to_ptr.hbm [resolvable:$true] %s959
          %962 = dma.vmem_to_hbm [thread:$0]  %s958, 16, %s960, %s947
        $region64: #{tpu_custom_call.1} parent=55 // pred_fallthru
          _
      $region56: #{tpu_custom_call.1} parent=5 // pred_fallthru
        _
      %p963 = scmp.le.s32.totalorder 2, %s21
      // Predicated region
      $region65: #{tpu_custom_call.1} parent=5 // pred_check
        %p964 = pneg %p963
      $region66: #{tpu_custom_call.1} parent=5 // pred_check_branch
        %966 = sbr.rel (%p964) target = $region68
      $region67: #{tpu_custom_call.1} parent=5 // pred_region
        %s967 = ssub.s32 %s21, 2
        // Predicated region
        $region69: #{tpu_custom_call.1} parent=67 // pred_check
          %p968 = pneg %p244
        $region70: #{tpu_custom_call.1} parent=67 // pred_check_branch
          %970 = sbr.rel (%p968) target = $region72
        $region71: #{tpu_custom_call.1} parent=67 // pred_region
          %s971 = sand.u32 %s229, 1
          %s972 = scalar_lea.sflag [#allocation4], %s971
          %s973 = sand.u32 %s229, 1
          %s974 = scalar_lea.vmem [#allocation5], %s973
          %976 = dma.done %s972, 16
        $region72: #{tpu_custom_call.1} parent=67 // pred_fallthru
          _
      $region68: #{tpu_custom_call.1} parent=5 // pred_fallthru
        _
    $region6: #{tpu_custom_call.1} parent=1 // loop_footer
      %s25 = sadd.s32 1, %s21
    $region7: #{tpu_custom_call.1} parent=1 // loop_footer_branch
      %20 = sbr.rel target = $region3
    $region8: #{tpu_custom_call.1} parent=1 // loop_exit
      _
    %977 = vsyncpa [#allocation3], 1
    %s978 = scalar_lea.sflag [#allocation3], 1
    %979 = vsyncpa %s978, 1
    %980 = vsyncpa [#allocation4], 1
    %s981 = scalar_lea.sflag [#allocation4], 1
    %982 = vsyncpa %s981, 1

</llo_original>
